<compile_context>
chip_gen: v6e
topology: v6e:2x2x1
jax: 0.10.0
libtpu: 0.0.40
codegen_flags: <defaults>
</compile_context>

<pallas_src>
import functools
import math

import jax
import jax.numpy as jnp
from jax.experimental import pallas as pl
from jax.experimental.pallas import tpu as pltpu

BN_EPS = 1e-5
SLAB_LANES = 128       # small-weight slab lane width
SLAB_ROW_ALIGN = 16    # bf16 sublane packing -> keep row offsets 16-aligned


# ----------------------------------------------------------------------------
# Layer configuration derived from AutoEncoder.__init__
# ----------------------------------------------------------------------------
def build_layer_cfg(layers, input_shape):
    """Returns tuple of (in_features, out_features, has_bn_relu)."""
    hw = input_shape[0] * input_shape[1]
    enc = tuple(layers)
    dec = tuple(reversed(layers))
    cfg = []
    # encoder = Flatten, Linear(H*W, enc[0]), *EncoderLayers, Linear(enc[-2], enc[-1])
    cfg.append((hw, enc[0], False))
    for i in range(len(enc) - 2):
        cfg.append((enc[i], enc[i + 1], True))      # Linear + BatchNorm1d + ReLU
    cfg.append((enc[-2], enc[-1], False))
    # decoder = *EncoderLayers, Linear(dec[-2], dec[-1]), Linear(dec[-1], H*W)
    for i in range(len(dec) - 2):
        cfg.append((dec[i], dec[i + 1], True))      # Linear + BatchNorm1d + ReLU
    cfg.append((dec[-2], dec[-1], False))
    cfg.append((dec[-1], hw, False))
    return tuple(cfg)


def _in_slab(din, dout):
    # Small weights (both dims < 128) go into the packed lane-dense slab;
    # the two 256-wide weights stay as separate bf16 operands.
    return din < 128 and dout < 128


def _vec_width(layer_cfg):
    max_dout = max(dout for _, dout, _ in layer_cfg)
    return max(128, pl.cdiv(max_dout, 128) * 128)


def _round_up(x, m):
    return ((x + m - 1) // m) * m


# ----------------------------------------------------------------------------
# Pallas kernel: fused MLP with training-mode BatchNorm1d + ReLU
# ----------------------------------------------------------------------------
def make_autoencoder_kernel(layer_cfg, slab_rows):
    def kernel(x_ref, vecs_ref, slab_ref, *rest):
        out_ref = rest[-1]
        big_refs = rest[:-1]

        h = x_ref[...]                                   # (B, hw) bf16
        vrow = 0
        bi = 0
        for li, (din, dout, has_bn) in enumerate(layer_cfg):
            if slab_rows[li] is not None:
                r0 = slab_rows[li]
                w = slab_ref[r0:r0 + din, :dout]         # static bf16 slab slice
            else:
                w = big_refs[bi][...]                    # separate bf16 weight
                bi += 1
            # Single-pass bf16 MXU matmul, f32 accumulation.
            acc = jnp.dot(h.astype(jnp.bfloat16), w,
                          preferred_element_type=jnp.float32)
            if has_bn:
                # Linear bias before training-mode BN is a no-op -> dropped.
                gamma = vecs_ref[vrow:vrow + 1, :dout]   # (1, dout) f32
                beta = vecs_ref[vrow + 1:vrow + 2, :dout]
                vrow += 2
                # One-pass batch stats: sum / sum-of-squares reductions are
                # independent (overlap on the XLU); biased variance, matching
                # PyTorch's normalization path.
                inv_n = 1.0 / acc.shape[0]
                s = jnp.sum(acc, axis=0, keepdims=True)
                ss = jnp.sum(acc * acc, axis=0, keepdims=True)
                mean = s * inv_n
                var = ss * inv_n - mean * mean
                scale = gamma * jax.lax.rsqrt(var + BN_EPS)   # (1, dout)
                shift = beta - mean * scale                   # (1, dout)
                h = jnp.maximum(acc * scale + shift, 0.0)     # BN + ReLU (f32)
            else:
                b = vecs_ref[vrow:vrow + 1, :dout]       # (1, dout) f32
                vrow += 1
                h = acc + b
        out_ref[...] = h.astype(out_ref.dtype)
    return kernel


# ----------------------------------------------------------------------------
# Parameter init (deterministic, PyTorch-default-style uniform for Linear;
# gamma=1, beta=0 for BatchNorm1d).  Weights are bf16 (MXU operands); biases
# (non-BN layers only) / gammas / betas are packed row-wise into a single
# lane-dense (n_rows, vec_width) f32 array.
# ----------------------------------------------------------------------------
def init_params(key, layer_cfg):
    vec_w = _vec_width(layer_cfg)
    weights = []
    vec_rows = []
    for (din, dout, has_bn) in layer_cfg:
        key, kw, kb = jax.random.split(key, 3)
        bound = 1.0 / math.sqrt(din)
        w = jax.random.uniform(kw, (din, dout), jnp.float32, -bound, bound)
        weights.append(w.astype(jnp.bfloat16))
        if has_bn:
            # Bias dropped: it is exactly cancelled by the following BN's
            # mean subtraction (training mode).
            vec_rows.append(jnp.pad(jnp.ones((dout,), jnp.float32), (0, vec_w - dout)))
            vec_rows.append(jnp.pad(jnp.zeros((dout,), jnp.float32), (0, vec_w - dout)))
        else:
            b = jax.random.uniform(kb, (dout,), jnp.float32, -bound, bound)
            vec_rows.append(jnp.pad(b, (0, vec_w - dout)))
    vecs = jnp.stack(vec_rows, axis=0)                   # (n_rows, vec_w) f32
    return weights, vecs


def pack_small_weights(weights, layer_cfg):
    """Pack small weights into one lane-dense bf16 slab; return slab + row map."""
    slab_rows = []
    rows = 0
    for (din, dout, _) in layer_cfg:
        if _in_slab(din, dout):
            slab_rows.append(rows)
            rows += _round_up(din, SLAB_ROW_ALIGN)
        else:
            slab_rows.append(None)
    rows = max(rows, SLAB_ROW_ALIGN)
    slab = jnp.zeros((rows, SLAB_LANES), jnp.bfloat16)
    for li, r0 in enumerate(slab_rows):
        if r0 is not None:
            din, dout, _ = layer_cfg[li]
            slab = slab.at[r0:r0 + din, :dout].set(weights[li])
    return slab, tuple(slab_rows)


# ----------------------------------------------------------------------------
# Wrapper: reshape glue in plain JAX, hot path in the Pallas kernel
# ----------------------------------------------------------------------------
@functools.partial(jax.jit, static_argnums=(4, 5))
def autoencoder_forward(x, slab, big_weights, vecs, layer_cfg, slab_rows):
    B = x.shape[0]
    hw = layer_cfg[0][0]
    # bf16 feed: halves the input DMA bytes and removes the in-kernel cast
    # for layer 0 (this reshape/astype op existed already).
    x_flat = x.reshape(B, hw).astype(jnp.bfloat16)

    kernel = make_autoencoder_kernel(layer_cfg, slab_rows)
    operands = (x_flat, vecs, slab, *big_weights)

    # Advisory cost estimate for XLA's scheduler around the custom call.
    flops = 2 * B * sum(din * dout for din, dout, _ in layer_cfg)
    transcendentals = sum(dout for _, dout, has_bn in layer_cfg if has_bn)  # rsqrt
    param_bytes = (vecs.size * 4 + slab.size * 2
                   + sum(w.size * w.dtype.itemsize for w in big_weights))
    bytes_accessed = x_flat.size * 2 + B * hw * 4 + param_bytes
    cost = pl.CostEstimate(flops=flops, transcendentals=transcendentals,
                           bytes_accessed=bytes_accessed)

    # Every operand is small and grid-invariant: full-extent blocks, VMEM
    # resident for the whole (single-step) grid.
    in_specs = [pl.BlockSpec(a.shape, lambda i, nd=a.ndim: (0,) * nd)
                for a in operands]
    out_spec = pl.BlockSpec((B, hw), lambda i: (0, 0))   # lane-dense (hw=256)

    out_flat = pl.pallas_call(
        kernel,
        grid=(1,),
        in_specs=in_specs,
        out_specs=out_spec,
        out_shape=jax.ShapeDtypeStruct((B, hw), jnp.float32),
        cost_estimate=cost,
        compiler_params=pltpu.CompilerParams(
            dimension_semantics=("arbitrary",),
            # Explicit limit; re-derive against v7x's 64 MiB VMEM if tiles grow.
            vmem_limit_bytes=16 * 1024 * 1024,
        ),
    )(*operands)

    return out_flat.reshape(x.shape)


# ----------------------------------------------------------------------------
# Pure-JAX reference (mirrors the kernel's math exactly: bf16 MXU operands,
# dropped bias-before-BN, one-pass BN stats)
# ----------------------------------------------------------------------------
def reference_forward(x, weights, vecs, layer_cfg):
    B = x.shape[0]
    h = x.reshape(B, -1).astype(jnp.bfloat16)
    vrow = 0
    for li, (din, dout, has_bn) in enumerate(layer_cfg):
        w = weights[li]                                  # bf16
        acc = jnp.dot(h.astype(jnp.bfloat16), w,
                      preferred_element_type=jnp.float32)
        if has_bn:
            gamma = vecs[vrow:vrow + 1, :dout]
            beta = vecs[vrow + 1:vrow + 2, :dout]
            vrow += 2
            inv_n = 1.0 / acc.shape[0]
            s = jnp.sum(acc, axis=0, keepdims=True)
            ss = jnp.sum(acc * acc, axis=0, keepdims=True)
            mean = s * inv_n
            var = ss * inv_n - mean * mean
            scale = gamma * jax.lax.rsqrt(var + BN_EPS)
            shift = beta - mean * scale
            h = jnp.maximum(acc * scale + shift, 0.0)
        else:
            b = vecs[vrow:vrow + 1, :dout]
            vrow += 1
            h = acc + b
    return h.reshape(x.shape)


if __name__ == "__main__":
    # AutoEncoder(layers=(32, 16, 8), input_shape=(16, 16)), batch = 8
    layers = (32, 16, 8)
    input_shape = (16, 16)
    batch = 8

    layer_cfg = build_layer_cfg(layers, input_shape)

    key = jax.random.PRNGKey(0)
    key, kx = jax.random.split(key)
    x = jax.random.normal(kx, (batch, *input_shape), jnp.float32)
    weights, vecs = init_params(key, layer_cfg)
    slab, slab_rows = pack_small_weights(weights, layer_cfg)
    big_weights = [weights[li] for li in range(len(layer_cfg))
                   if slab_rows[li] is None]

    out = autoencoder_forward(x, slab, big_weights, vecs, layer_cfg, slab_rows)
    out = jax.block_until_ready(out)

    ref = reference_forward(x, weights, vecs, layer_cfg)
    assert out.shape == x.shape
    assert jnp.allclose(out, ref, atol=2e-3, rtol=2e-3), "mismatch vs reference"

    print("KERNEL_OK")
</pallas_src>

<mosaic_0001>
module attributes {stable_mosaic.version = 11 : i64} {
  func.func @kernel(%arg0: i32, %arg1: memref<8x256xbf16, #tpu.memory_space<vmem>>, %arg2: memref<8x256xf32, #tpu.memory_space<vmem>>, %arg3: memref<80x128xbf16, #tpu.memory_space<vmem>>, %arg4: memref<256x32xbf16, #tpu.memory_space<vmem>>, %arg5: memref<32x256xbf16, #tpu.memory_space<vmem>>, %arg6: memref<8x256xf32, #tpu.memory_space<vmem>>) attributes {dimension_semantics = [#tpu.dimension_semantics<arbitrary>], iteration_bounds = array<i64: 1>, scalar_prefetch = 0 : i64, scratch_operands = 0 : i64, tpu.core_type = #tpu.core_type<tc>, window_params = [{pipeline_mode = #tpu.pipeline_mode<synchronous>, transform_indices = @transform_0, window_bounds = array<i64: 8, 256>}, {pipeline_mode = #tpu.pipeline_mode<synchronous>, transform_indices = @transform_1, window_bounds = array<i64: 8, 256>}, {pipeline_mode = #tpu.pipeline_mode<synchronous>, transform_indices = @transform_2, window_bounds = array<i64: 80, 128>}, {pipeline_mode = #tpu.pipeline_mode<synchronous>, transform_indices = @transform_3, window_bounds = array<i64: 256, 32>}, {pipeline_mode = #tpu.pipeline_mode<synchronous>, transform_indices = @transform_4, window_bounds = array<i64: 32, 256>}, {pipeline_mode = #tpu.pipeline_mode<synchronous>, transform_indices = @transform_5, window_bounds = array<i64: 8, 256>}]} {
    %c0 = arith.constant 0 : index
    %c0_0 = arith.constant 0 : index
    %0 = vector.load %arg1[%c0, %c0_0] : memref<8x256xbf16, #tpu.memory_space<vmem>>, vector<8x256xbf16>
    %c0_1 = arith.constant 0 : index
    %c0_2 = arith.constant 0 : index
    %1 = vector.load %arg4[%c0_1, %c0_2] : memref<256x32xbf16, #tpu.memory_space<vmem>>, vector<256x32xbf16>
    %cst = arith.constant dense<0.000000e+00> : vector<8x32xf32>
    %2 = tpu.matmul %0, %1, %cst {dimension_numbers = #tpu.dot_dimension_numbers<[1], [0], [0], [1], [0, 0, 1, 1], [], []>} : vector<8x256xbf16>, vector<256x32xbf16>, vector<8x32xf32> -> vector<8x32xf32>
    %c0_3 = arith.constant 0 : index
    %c0_4 = arith.constant 0 : index
    %3 = vector.load %arg2[%c0_3, %c0_4] : memref<8x256xf32, #tpu.memory_space<vmem>>, vector<1x32xf32>
    %4 = vector.broadcast %3 : vector<1x32xf32> to vector<8x32xf32>
    %5 = arith.addf %2, %4 : vector<8x32xf32>
    %c0_5 = arith.constant 0 : index
    %c0_6 = arith.constant 0 : index
    %6 = vector.load %arg3[%c0_5, %c0_6] : memref<80x128xbf16, #tpu.memory_space<vmem>>, vector<32x16xbf16>
    %7 = arith.truncf %5 : vector<8x32xf32> to vector<8x32xbf16>
    %cst_7 = arith.constant dense<0.000000e+00> : vector<8x16xf32>
    %8 = tpu.matmul %7, %6, %cst_7 {dimension_numbers = #tpu.dot_dimension_numbers<[1], [0], [0], [1], [0, 0, 1, 1], [], []>} : vector<8x32xbf16>, vector<32x16xbf16>, vector<8x16xf32> -> vector<8x16xf32>
    %c1 = arith.constant 1 : index
    %c0_8 = arith.constant 0 : index
    %9 = vector.load %arg2[%c1, %c0_8] : memref<8x256xf32, #tpu.memory_space<vmem>>, vector<1x16xf32>
    %c2 = arith.constant 2 : index
    %c0_9 = arith.constant 0 : index
    %10 = vector.load %arg2[%c2, %c0_9] : memref<8x256xf32, #tpu.memory_space<vmem>>, vector<1x16xf32>
    %cst_10 = arith.constant dense<0.000000e+00> : vector<16xf32>
    %11 = vector.multi_reduction <add>, %8, %cst_10 [0] : vector<8x16xf32> to vector<16xf32>
    %12 = vector.shape_cast %11 : vector<16xf32> to vector<1x16xf32>
    %13 = arith.mulf %8, %8 : vector<8x16xf32>
    %cst_11 = arith.constant dense<0.000000e+00> : vector<16xf32>
    %14 = vector.multi_reduction <add>, %13, %cst_11 [0] : vector<8x16xf32> to vector<16xf32>
    %15 = vector.shape_cast %14 : vector<16xf32> to vector<1x16xf32>
    %cst_12 = arith.constant 1.250000e-01 : f32
    %16 = vector.broadcast %cst_12 : f32 to vector<1x16xf32>
    %17 = arith.mulf %12, %16 : vector<1x16xf32>
    %cst_13 = arith.constant 1.250000e-01 : f32
    %18 = vector.broadcast %cst_13 : f32 to vector<1x16xf32>
    %19 = arith.mulf %15, %18 : vector<1x16xf32>
    %20 = arith.mulf %17, %17 : vector<1x16xf32>
    %21 = arith.subf %19, %20 : vector<1x16xf32>
    %cst_14 = arith.constant 9.99999974E-6 : f32
    %22 = vector.broadcast %cst_14 : f32 to vector<1x16xf32>
    %23 = arith.addf %21, %22 : vector<1x16xf32>
    %24 = math.rsqrt %23 : vector<1x16xf32>
    %25 = arith.mulf %9, %24 : vector<1x16xf32>
    %26 = arith.mulf %17, %25 : vector<1x16xf32>
    %27 = arith.subf %10, %26 : vector<1x16xf32>
    %28 = vector.broadcast %25 : vector<1x16xf32> to vector<8x16xf32>
    %29 = arith.mulf %8, %28 : vector<8x16xf32>
    %30 = vector.broadcast %27 : vector<1x16xf32> to vector<8x16xf32>
    %31 = arith.addf %29, %30 : vector<8x16xf32>
    %cst_15 = arith.constant 0.000000e+00 : f32
    %32 = vector.broadcast %cst_15 : f32 to vector<8x16xf32>
    %33 = arith.maximumf %31, %32 : vector<8x16xf32>
    %c32 = arith.constant 32 : index
    %c0_16 = arith.constant 0 : index
    %34 = vector.load %arg3[%c32, %c0_16] : memref<80x128xbf16, #tpu.memory_space<vmem>>, vector<16x8xbf16>
    %35 = arith.truncf %33 : vector<8x16xf32> to vector<8x16xbf16>
    %cst_17 = arith.constant dense<0.000000e+00> : vector<8x8xf32>
    %36 = tpu.matmul %35, %34, %cst_17 {dimension_numbers = #tpu.dot_dimension_numbers<[1], [0], [0], [1], [0, 0, 1, 1], [], []>} : vector<8x16xbf16>, vector<16x8xbf16>, vector<8x8xf32> -> vector<8x8xf32>
    %c3 = arith.constant 3 : index
    %c0_18 = arith.constant 0 : index
    %37 = vector.load %arg2[%c3, %c0_18] : memref<8x256xf32, #tpu.memory_space<vmem>>, vector<1x8xf32>
    %38 = vector.broadcast %37 : vector<1x8xf32> to vector<8x8xf32>
    %39 = arith.addf %36, %38 : vector<8x8xf32>
    %c48 = arith.constant 48 : index
    %c0_19 = arith.constant 0 : index
    %40 = vector.load %arg3[%c48, %c0_19] : memref<80x128xbf16, #tpu.memory_space<vmem>>, vector<8x16xbf16>
    %41 = arith.truncf %39 : vector<8x8xf32> to vector<8x8xbf16>
    %cst_20 = arith.constant dense<0.000000e+00> : vector<8x16xf32>
    %42 = tpu.matmul %41, %40, %cst_20 {dimension_numbers = #tpu.dot_dimension_numbers<[1], [0], [0], [1], [0, 0, 1, 1], [], []>} : vector<8x8xbf16>, vector<8x16xbf16>, vector<8x16xf32> -> vector<8x16xf32>
    %c4 = arith.constant 4 : index
    %c0_21 = arith.constant 0 : index
    %43 = vector.load %arg2[%c4, %c0_21] : memref<8x256xf32, #tpu.memory_space<vmem>>, vector<1x16xf32>
    %c5 = arith.constant 5 : index
    %c0_22 = arith.constant 0 : index
    %44 = vector.load %arg2[%c5, %c0_22] : memref<8x256xf32, #tpu.memory_space<vmem>>, vector<1x16xf32>
    %cst_23 = arith.constant dense<0.000000e+00> : vector<16xf32>
    %45 = vector.multi_reduction <add>, %42, %cst_23 [0] : vector<8x16xf32> to vector<16xf32>
    %46 = vector.shape_cast %45 : vector<16xf32> to vector<1x16xf32>
    %47 = arith.mulf %42, %42 : vector<8x16xf32>
    %cst_24 = arith.constant dense<0.000000e+00> : vector<16xf32>
    %48 = vector.multi_reduction <add>, %47, %cst_24 [0] : vector<8x16xf32> to vector<16xf32>
    %49 = vector.shape_cast %48 : vector<16xf32> to vector<1x16xf32>
    %cst_25 = arith.constant 1.250000e-01 : f32
    %50 = vector.broadcast %cst_25 : f32 to vector<1x16xf32>
    %51 = arith.mulf %46, %50 : vector<1x16xf32>
    %cst_26 = arith.constant 1.250000e-01 : f32
    %52 = vector.broadcast %cst_26 : f32 to vector<1x16xf32>
    %53 = arith.mulf %49, %52 : vector<1x16xf32>
    %54 = arith.mulf %51, %51 : vector<1x16xf32>
    %55 = arith.subf %53, %54 : vector<1x16xf32>
    %cst_27 = arith.constant 9.99999974E-6 : f32
    %56 = vector.broadcast %cst_27 : f32 to vector<1x16xf32>
    %57 = arith.addf %55, %56 : vector<1x16xf32>
    %58 = math.rsqrt %57 : vector<1x16xf32>
    %59 = arith.mulf %43, %58 : vector<1x16xf32>
    %60 = arith.mulf %51, %59 : vector<1x16xf32>
    %61 = arith.subf %44, %60 : vector<1x16xf32>
    %62 = vector.broadcast %59 : vector<1x16xf32> to vector<8x16xf32>
    %63 = arith.mulf %42, %62 : vector<8x16xf32>
    %64 = vector.broadcast %61 : vector<1x16xf32> to vector<8x16xf32>
    %65 = arith.addf %63, %64 : vector<8x16xf32>
    %cst_28 = arith.constant 0.000000e+00 : f32
    %66 = vector.broadcast %cst_28 : f32 to vector<8x16xf32>
    %67 = arith.maximumf %65, %66 : vector<8x16xf32>
    %c64 = arith.constant 64 : index
    %c0_29 = arith.constant 0 : index
    %68 = vector.load %arg3[%c64, %c0_29] : memref<80x128xbf16, #tpu.memory_space<vmem>>, vector<16x32xbf16>
    %69 = arith.truncf %67 : vector<8x16xf32> to vector<8x16xbf16>
    %cst_30 = arith.constant dense<0.000000e+00> : vector<8x32xf32>
    %70 = tpu.matmul %69, %68, %cst_30 {dimension_numbers = #tpu.dot_dimension_numbers<[1], [0], [0], [1], [0, 0, 1, 1], [], []>} : vector<8x16xbf16>, vector<16x32xbf16>, vector<8x32xf32> -> vector<8x32xf32>
    %c6 = arith.constant 6 : index
    %c0_31 = arith.constant 0 : index
    %71 = vector.load %arg2[%c6, %c0_31] : memref<8x256xf32, #tpu.memory_space<vmem>>, vector<1x32xf32>
    %72 = vector.broadcast %71 : vector<1x32xf32> to vector<8x32xf32>
    %73 = arith.addf %70, %72 : vector<8x32xf32>
    %c0_32 = arith.constant 0 : index
    %c0_33 = arith.constant 0 : index
    %74 = vector.load %arg5[%c0_32, %c0_33] : memref<32x256xbf16, #tpu.memory_space<vmem>>, vector<32x256xbf16>
    %75 = arith.truncf %73 : vector<8x32xf32> to vector<8x32xbf16>
    %cst_34 = arith.constant dense<0.000000e+00> : vector<8x256xf32>
    %76 = tpu.matmul %75, %74, %cst_34 {dimension_numbers = #tpu.dot_dimension_numbers<[1], [0], [0], [1], [0, 0, 1, 1], [], []>} : vector<8x32xbf16>, vector<32x256xbf16>, vector<8x256xf32> -> vector<8x256xf32>
    %c7 = arith.constant 7 : index
    %c0_35 = arith.constant 0 : index
    %77 = vector.load %arg2[%c7, %c0_35] : memref<8x256xf32, #tpu.memory_space<vmem>>, vector<1x256xf32>
    %78 = vector.broadcast %77 : vector<1x256xf32> to vector<8x256xf32>
    %79 = arith.addf %76, %78 : vector<8x256xf32>
    %c0_36 = arith.constant 0 : index
    %c0_37 = arith.constant 0 : index
    %80 = vector.load %arg6[%c0_36, %c0_37] : memref<8x256xf32, #tpu.memory_space<vmem>>, vector<8x256xf32>
    tpu.vector_store %arg6[%c0_36, %c0_37], %79 {strides = array<i32>} : memref<8x256xf32, #tpu.memory_space<vmem>>, vector<8x256xf32>,
    return
  }
  func.func @transform_0(%arg0: i32) -> (i32, i32) {
    %c0_i32 = arith.constant 0 : i32
    %c0_i32_0 = arith.constant 0 : i32
    %c0_i32_1 = arith.constant 0 : i32
    return %c0_i32, %c0_i32_0 : i32, i32
  }
  func.func @transform_1(%arg0: i32) -> (i32, i32) {
    %c0_i32 = arith.constant 0 : i32
    %c0_i32_0 = arith.constant 0 : i32
    %c0_i32_1 = arith.constant 0 : i32
    return %c0_i32, %c0_i32_0 : i32, i32
  }
  func.func @transform_2(%arg0: i32) -> (i32, i32) {
    %c0_i32 = arith.constant 0 : i32
    %c0_i32_0 = arith.constant 0 : i32
    %c0_i32_1 = arith.constant 0 : i32
    return %c0_i32, %c0_i32_0 : i32, i32
  }
  func.func @transform_3(%arg0: i32) -> (i32, i32) {
    %c0_i32 = arith.constant 0 : i32
    %c0_i32_0 = arith.constant 0 : i32
    %c0_i32_1 = arith.constant 0 : i32
    return %c0_i32, %c0_i32_0 : i32, i32
  }
  func.func @transform_4(%arg0: i32) -> (i32, i32) {
    %c0_i32 = arith.constant 0 : i32
    %c0_i32_0 = arith.constant 0 : i32
    %c0_i32_1 = arith.constant 0 : i32
    return %c0_i32, %c0_i32_0 : i32, i32
  }
  func.func @transform_5(%arg0: i32) -> (i32, i32) {
    %c0_i32 = arith.constant 0 : i32
    %c0_i32_0 = arith.constant 0 : i32
    %c0_i32_1 = arith.constant 0 : i32
    return %c0_i32, %c0_i32_0 : i32, i32
  }
}

</mosaic_0001>

<llo_original>
// kernel: autoencoder_forward.1
$region0: #{autoencoder_forward.1}
  #allocation0 [shape = 'u32[]', space=smem, size = 0x4, offset = 0x4, fixed_abs, tag = 'smem constant byte address 0x4 - core index']
  #allocation1 [shape = 'u32[144,128]{1,0:T(1,128)}', space=vmem, size = 0x12000, scoped, tag = 'internal scratch']
  %s0 = inlined_call_operand.vmem [shape: bf16[8,256], index: 0, kind: input, shape index: {}]
  %s1 = inlined_call_operand.vmem [shape: f32[8,256], index: 1, kind: input, shape index: {}]
  %s2 = inlined_call_operand.vmem [shape: bf16[80,128], index: 2, kind: input, shape index: {}]
  %s3 = inlined_call_operand.vmem [shape: bf16[256,32], index: 3, kind: input, shape index: {}]
  %s4 = inlined_call_operand.vmem [shape: bf16[32,256], index: 4, kind: input, shape index: {}]
  %s5 = inlined_call_operand.vmem [shape: f32[8,256], index: 5, kind: output, shape index: {}]
  %s6 = sld [smem:[#allocation0]]
  $region30: #{autoencoder_forward.1} parent=0
    _
  %s8 = ssub.s32 1, %s6
  %s9 = scalar_select 0, %s8, %s6
  // Predicated region
  $region2: #{autoencoder_forward.1} parent=0 // pred_check
    _
  $region3: #{autoencoder_forward.1} parent=0 // pred_check_branch
    %11 = sbr.rel (0) target = $region5
  $region4: #{autoencoder_forward.1} parent=0 // pred_region
    _
  $region5: #{autoencoder_forward.1} parent=0 // pred_fallthru
    _
  // Predicated region
  $region6: #{autoencoder_forward.1} parent=0 // pred_check
    _
  $region7: #{autoencoder_forward.1} parent=0 // pred_check_branch
    %13 = sbr.rel (0) target = $region9
  $region8: #{autoencoder_forward.1} parent=0 // pred_region
    _
  $region9: #{autoencoder_forward.1} parent=0 // pred_fallthru
    _
  // Predicated region
  $region10: #{autoencoder_forward.1} parent=0 // pred_check
    _
  $region11: #{autoencoder_forward.1} parent=0 // pred_check_branch
    %15 = sbr.rel (0) target = $region13
  $region12: #{autoencoder_forward.1} parent=0 // pred_region
    _
  $region13: #{autoencoder_forward.1} parent=0 // pred_fallthru
    _
  // Predicated region
  $region14: #{autoencoder_forward.1} parent=0 // pred_check
    _
  $region15: #{autoencoder_forward.1} parent=0 // pred_check_branch
    %17 = sbr.rel (0) target = $region17
  $region16: #{autoencoder_forward.1} parent=0 // pred_region
    _
  $region17: #{autoencoder_forward.1} parent=0 // pred_fallthru
    _
  // Predicated region
  $region18: #{autoencoder_forward.1} parent=0 // pred_check
    _
  $region19: #{autoencoder_forward.1} parent=0 // pred_check_branch
    %19 = sbr.rel (0) target = $region21
  $region20: #{autoencoder_forward.1} parent=0 // pred_region
    _
  $region21: #{autoencoder_forward.1} parent=0 // pred_fallthru
    _
  %v21 = vld [vmem:[%s0] sm:$0xff]
  %v22 = vld [vmem:[%s3] sm:$0xf]
  %v23 = vld [vmem:[%s3 + $0x4] sm:$0xf]
  %v24 = vld [vmem:[%s3 + $0x8] sm:$0xf]
  %v25 = vld [vmem:[%s3 + $0xc] sm:$0xf]
  %v26 = vld [vmem:[%s3 + $0x10] sm:$0xf]
  %v27 = vld [vmem:[%s3 + $0x14] sm:$0xf]
  %v28 = vld [vmem:[%s3 + $0x18] sm:$0xf]
  %v29 = vld [vmem:[%s3 + $0x1c] sm:$0xf]
  %v30 = vld [vmem:[%s3 + $0x20] sm:$0xf]
  %v31 = vld [vmem:[%s3 + $0x24] sm:$0xf]
  %v32 = vld [vmem:[%s3 + $0x28] sm:$0xf]
  %v33 = vld [vmem:[%s3 + $0x2c] sm:$0xf]
  %v34 = vld [vmem:[%s3 + $0x30] sm:$0xf]
  %v35 = vld [vmem:[%s3 + $0x34] sm:$0xf]
  %v36 = vld [vmem:[%s3 + $0x38] sm:$0xf]
  %v37 = vld [vmem:[%s3 + $0x3c] sm:$0xf]
  %v38 = vld [vmem:[%s3 + $0x40] sm:$0xf]
  %v39 = vld [vmem:[%s3 + $0x44] sm:$0xf]
  %v40 = vld [vmem:[%s3 + $0x48] sm:$0xf]
  %v41 = vld [vmem:[%s3 + $0x4c] sm:$0xf]
  %v42 = vld [vmem:[%s3 + $0x50] sm:$0xf]
  %v43 = vld [vmem:[%s3 + $0x54] sm:$0xf]
  %v44 = vld [vmem:[%s3 + $0x58] sm:$0xf]
  %v45 = vld [vmem:[%s3 + $0x5c] sm:$0xf]
  %v46 = vld [vmem:[%s3 + $0x60] sm:$0xf]
  %v47 = vld [vmem:[%s3 + $0x64] sm:$0xf]
  %v48 = vld [vmem:[%s3 + $0x68] sm:$0xf]
  %v49 = vld [vmem:[%s3 + $0x6c] sm:$0xf]
  %v50 = vld [vmem:[%s3 + $0x70] sm:$0xf]
  %v51 = vld [vmem:[%s3 + $0x74] sm:$0xf]
  %v52 = vld [vmem:[%s3 + $0x78] sm:$0xf]
  %v53 = vld [vmem:[%s3 + $0x7c] sm:$0xf]
  %v54 = vld [vmem:[%s1] ss:$0 sm:$0xff]
  %v56 = vunpack.c.l.b16 %v21
  %v57 = vunpack.c.h.b16 %v21
  %v58 = vpack.c.b16 %v56, %v56
  %v59 = vpack.c.b16 %v57, %v57
  %v94 = vunpack.c.l.b16 %v22
  %v95 = vunpack.c.l.b16 %v23
  %v96 = vunpack.c.l.b16 %v24
  %v97 = vunpack.c.l.b16 %v25
  %v98 = vunpack.c.l.b16 %v26
  %v99 = vunpack.c.l.b16 %v27
  %v100 = vunpack.c.l.b16 %v28
  %v101 = vunpack.c.l.b16 %v29
  %v102 = vunpack.c.l.b16 %v30
  %v103 = vunpack.c.l.b16 %v31
  %v104 = vunpack.c.l.b16 %v32
  %v105 = vunpack.c.l.b16 %v33
  %v106 = vunpack.c.l.b16 %v34
  %v107 = vunpack.c.l.b16 %v35
  %v108 = vunpack.c.l.b16 %v36
  %v109 = vunpack.c.l.b16 %v37
  %v110 = vunpack.c.l.b16 %v38
  %v111 = vunpack.c.l.b16 %v39
  %v112 = vunpack.c.l.b16 %v40
  %v113 = vunpack.c.l.b16 %v41
  %v114 = vunpack.c.l.b16 %v42
  %v115 = vunpack.c.l.b16 %v43
  %v116 = vunpack.c.l.b16 %v44
  %v117 = vunpack.c.l.b16 %v45
  %v118 = vunpack.c.l.b16 %v46
  %v119 = vunpack.c.l.b16 %v47
  %v120 = vunpack.c.l.b16 %v48
  %v121 = vunpack.c.l.b16 %v49
  %v122 = vunpack.c.l.b16 %v50
  %v123 = vunpack.c.l.b16 %v51
  %v124 = vunpack.c.l.b16 %v52
  %v125 = vunpack.c.l.b16 %v53
  %v126 = vpack.c.b16 %v95, %v94
  %v127 = vpack.c.b16 %v97, %v96
  %v128 = vpack.c.b16 %v99, %v98
  %v129 = vpack.c.b16 %v101, %v100
  %v130 = vpack.c.b16 %v103, %v102
  %v131 = vpack.c.b16 %v105, %v104
  %v132 = vpack.c.b16 %v107, %v106
  %v133 = vpack.c.b16 %v109, %v108
  %v134 = vpack.c.b16 %v111, %v110
  %v135 = vpack.c.b16 %v113, %v112
  %v136 = vpack.c.b16 %v115, %v114
  %v137 = vpack.c.b16 %v117, %v116
  %v138 = vpack.c.b16 %v119, %v118
  %v139 = vpack.c.b16 %v121, %v120
  %v140 = vpack.c.b16 %v123, %v122
  %v141 = vpack.c.b16 %v125, %v124
  %158 = vmatprep.subr.bf16.mxu0 0
  %159 = vmatpush1.bf16.msra.mxu0 %v133
  %160 = vmatprep.subr.bf16.mxu0 0
  %161 = vmatpush1.bf16.msra.mxu0 %v132
  %162 = vmatprep.subr.bf16.mxu0 0
  %163 = vmatpush1.bf16.msra.mxu0 %v131
  %164 = vmatprep.subr.bf16.mxu0 0
  %165 = vmatpush1.bf16.msra.mxu0 %v130
  %166 = vmatprep.subr.bf16.mxu0 0
  %167 = vmatpush1.bf16.msra.mxu0 %v129
  %168 = vmatprep.subr.bf16.mxu0 0
  %169 = vmatpush1.bf16.msra.mxu0 %v128
  %170 = vmatprep.subr.bf16.mxu0 0
  %171 = vmatpush1.bf16.msra.mxu0 %v127
  %172 = vmatprep.subr.bf16.mxu0 0
  %173 = vmatpush1.bf16.msra.mxu0 %v126
  %174 = vmatprep.subr.bf16.mxu0 0
  %175 = vmatpush2.bf16.msra.mxu0 %v141
  %176 = vmatprep.subr.bf16.mxu0 0
  %177 = vmatpush2.bf16.msra.mxu0 %v140
  %178 = vmatprep.subr.bf16.mxu0 0
  %179 = vmatpush2.bf16.msra.mxu0 %v139
  %180 = vmatprep.subr.bf16.mxu0 0
  %181 = vmatpush2.bf16.msra.mxu0 %v138
  %182 = vmatprep.subr.bf16.mxu0 0
  %183 = vmatpush2.bf16.msra.mxu0 %v137
  %184 = vmatprep.subr.bf16.mxu0 0
  %185 = vmatpush2.bf16.msra.mxu0 %v136
  %186 = vmatprep.subr.bf16.mxu0 0
  %187 = vmatpush2.bf16.msra.mxu0 %v135
  %188 = vmatprep.subr.bf16.mxu0 0
  %189 = vmatpush2.bf16.msra.mxu0 %v134
  %190 = vmatprep.mubr.bf16.mxu0 %v59
  %191 = vmatmul.mubr.bf16.gmra.mxu0 %v58
  %v192 = vpop.f32.mrf.mxu0
  %v193 = vadd.f32 %v54, %v192
  %v194 = vpop.f32.mrf.mxu0
  %v195 = vpop.f32.mrf.mxu0
  %v196 = vpop.f32.mrf.mxu0
  %197 = vdwg.mxu0
  %v198 = vld [vmem:[%s2] sm:$0xf]
  %v199 = vld [vmem:[%s2 + $0x4] sm:$0xf]
  %v200 = vld [vmem:[%s2 + $0x8] sm:$0xf]
  %v201 = vld [vmem:[%s2 + $0xc] sm:$0xf]
  %v202 = vpack.c.bf16 %v193, %v193
  %v207 = vunpack.c.l.b16 %v198
  %v208 = vunpack.c.l.b16 %v199
  %v209 = vunpack.c.l.b16 %v200
  %v210 = vunpack.c.l.b16 %v201
  %v211 = vpack.c.b16 %v208, %v207
  %v212 = vpack.c.b16 %v210, %v209
  %vm215 = vcmask 261120
  %v217 = vsel %vm215, %v202, 0
  %219 = vmatprep.subr.bf16.mxu0 0
  %220 = vmatpush1.bf16.msra.mxu0 0
  %221 = vmatprep.subr.bf16.mxu0 0
  %222 = vmatpush1.bf16.msra.mxu0 0
  %223 = vmatprep.subr.bf16.mxu0 0
  %224 = vmatpush1.bf16.msra.mxu0 0
  %225 = vmatprep.subr.bf16.mxu0 0
  %226 = vmatpush1.bf16.msra.mxu0 0
  %227 = vmatprep.subr.bf16.mxu0 0
  %228 = vmatpush1.bf16.msra.mxu0 0
  %229 = vmatprep.subr.bf16.mxu0 0
  %230 = vmatpush1.bf16.msra.mxu0 0
  %231 = vmatprep.subr.bf16.mxu0 0
  %232 = vmatpush1.bf16.msra.mxu0 %v212
  %233 = vmatprep.subr.bf16.mxu0 0
  %234 = vmatpush1.bf16.msra.mxu0 %v211
  %235 = vmatprep.subr.bf16.mxu0 0
  %236 = vmatpush2.bf16.msra.mxu0 0
  %237 = vmatprep.subr.bf16.mxu0 0
  %238 = vmatpush2.bf16.msra.mxu0 0
  %239 = vmatprep.subr.bf16.mxu0 0
  %240 = vmatpush2.bf16.msra.mxu0 0
  %241 = vmatprep.subr.bf16.mxu0 0
  %242 = vmatpush2.bf16.msra.mxu0 0
  %243 = vmatprep.subr.bf16.mxu0 0
  %244 = vmatpush2.bf16.msra.mxu0 0
  %245 = vmatprep.subr.bf16.mxu0 0
  %246 = vmatpush2.bf16.msra.mxu0 0
  %247 = vmatprep.subr.bf16.mxu0 0
  %248 = vmatpush2.bf16.msra.mxu0 0
  %249 = vmatprep.subr.bf16.mxu0 0
  %250 = vmatpush2.bf16.msra.mxu0 0
  %251 = vmatprep.mubr.bf16.mxu0 0
  %252 = vmatmul.mubr.bf16.gmra.mxu0 %v217
  %v253 = vpop.f32.mrf.mxu0
  %v254 = vadd.f32 0.0, %v253
  %v255 = vpop.f32.mrf.mxu0
  %v256 = vpop.f32.mrf.mxu0
  %v257 = vpop.f32.mrf.mxu0
  %258 = vdwg.mxu0
  %v259 = vld [vmem:[%s1 + $0x1] ss:$0 sm:$0xff]
  %v260 = vld [vmem:[%s1 + $0x2] ss:$0 sm:$0xff]
  %vm261 = vcmask 130048
  %v262 = vsel %vm261, %v254, 0.0
  %v263 = vrot.slane %v262, 4
  %v264 = vadd.f32 %v262, %v263
  %v265 = vrot.slane %v264, 2
  %v266 = vadd.f32 %v264, %v265
  %v267 = vrot.slane %v266, 1
  %v268 = vadd.f32 %v266, %v267
  %v269 = vmul.f32 %v254, %v254
  %v270 = vsel %vm261, %v269, 0.0
  %v271 = vrot.slane %v270, 4
  %v272 = vadd.f32 %v270, %v271
  %v273 = vrot.slane %v272, 2
  %v274 = vadd.f32 %v272, %v273
  %v275 = vrot.slane %v274, 1
  %v276 = vadd.f32 %v274, %v275
  %v277 = vmul.f32 %v268, 0.125
  %v278 = vmul.f32 %v276, 0.125
  %v279 = vmul.f32 %v277, %v277
  %v280 = vsub.f32 %v278, %v279
  %v281 = vadd.f32 %v280, 1e-05
  %v282 = vrsqrt.pop %v281
  %v283 = vmul.f32 %v259, %v282
  %v284 = vmul.f32 %v277, %v283
  %v285 = vsub.f32 %v260, %v284
  %v286 = vmul.f32 %v254, %v283
  %v287 = vadd.f32 %v286, %v285
  %v288 = vmax.f32 %v287, 0.0
  %v289 = vld [vmem:[%s2 + $0x10] sm:$0xf]
  %v290 = vld [vmem:[%s2 + $0x14] sm:$0xf]
  %v291 = vpack.c.bf16 %v288, %v288
  %v292 = vld [vmem:[%s1 + $0x3] ss:$0 sm:$0xff]
  %v295 = vunpack.c.l.b16 %v289
  %v296 = vunpack.c.l.b16 %v290
  %v297 = vpack.c.b16 %v296, %v295
  %v300 = vsel %vm261, %v291, 0
  %302 = vmatprep.subr.bf16.mxu0 0
  %303 = vmatpush1.bf16.msra.mxu0 0
  %304 = vmatprep.subr.bf16.mxu0 0
  %305 = vmatpush1.bf16.msra.mxu0 0
  %306 = vmatprep.subr.bf16.mxu0 0
  %307 = vmatpush1.bf16.msra.mxu0 0
  %308 = vmatprep.subr.bf16.mxu0 0
  %309 = vmatpush1.bf16.msra.mxu0 0
  %310 = vmatprep.subr.bf16.mxu0 0
  %311 = vmatpush1.bf16.msra.mxu0 0
  %312 = vmatprep.subr.bf16.mxu0 0
  %313 = vmatpush1.bf16.msra.mxu0 0
  %314 = vmatprep.subr.bf16.mxu0 0
  %315 = vmatpush1.bf16.msra.mxu0 0
  %316 = vmatprep.subr.bf16.mxu0 0
  %317 = vmatpush1.bf16.msra.mxu0 %v297
  %318 = vmatprep.subr.bf16.mxu0 0
  %319 = vmatpush2.bf16.msra.mxu0 0
  %320 = vmatprep.subr.bf16.mxu0 0
  %321 = vmatpush2.bf16.msra.mxu0 0
  %322 = vmatprep.subr.bf16.mxu0 0
  %323 = vmatpush2.bf16.msra.mxu0 0
  %324 = vmatprep.subr.bf16.mxu0 0
  %325 = vmatpush2.bf16.msra.mxu0 0
  %326 = vmatprep.subr.bf16.mxu0 0
  %327 = vmatpush2.bf16.msra.mxu0 0
  %328 = vmatprep.subr.bf16.mxu0 0
  %329 = vmatpush2.bf16.msra.mxu0 0
  %330 = vmatprep.subr.bf16.mxu0 0
  %331 = vmatpush2.bf16.msra.mxu0 0
  %332 = vmatprep.subr.bf16.mxu0 0
  %333 = vmatpush2.bf16.msra.mxu0 0
  %334 = vmatprep.mubr.bf16.mxu0 0
  %335 = vmatmul.mubr.bf16.gmra.mxu0 %v300
  %v336 = vpop.f32.mrf.mxu0
  %v337 = vadd.f32 %v292, %v336
  %v338 = vpop.f32.mrf.mxu0
  %v339 = vpop.f32.mrf.mxu0
  %v340 = vpop.f32.mrf.mxu0
  %341 = vdwg.mxu0
  %v342 = vld [vmem:[%s2 + $0x18] sm:$0xf]
  %v343 = vpack.c.bf16 %v337, %v337
  %vm344 = vcmask 64512
  %v346 = vsel %vm344, %v343, 0
  %vm348 = vcmask 1043456
  %v350 = vsel %vm348, %v342, 0
  %352 = vmatprep.subr.bf16.mxu0 0
  %353 = vmatpush1.bf16.msra.mxu0 0
  %354 = vmatprep.subr.bf16.mxu0 0
  %355 = vmatpush1.bf16.msra.mxu0 0
  %356 = vmatprep.subr.bf16.mxu0 0
  %357 = vmatpush1.bf16.msra.mxu0 0
  %358 = vmatprep.subr.bf16.mxu0 0
  %359 = vmatpush1.bf16.msra.mxu0 0
  %360 = vmatprep.subr.bf16.mxu0 0
  %361 = vmatpush1.bf16.msra.mxu0 0
  %362 = vmatprep.subr.bf16.mxu0 0
  %363 = vmatpush1.bf16.msra.mxu0 0
  %364 = vmatprep.subr.bf16.mxu0 0
  %365 = vmatpush1.bf16.msra.mxu0 0
  %366 = vmatprep.subr.bf16.mxu0 0
  %367 = vmatpush1.bf16.msra.mxu0 %v350
  %368 = vmatprep.subr.bf16.mxu0 0
  %369 = vmatpush2.bf16.msra.mxu0 0
  %370 = vmatprep.subr.bf16.mxu0 0
  %371 = vmatpush2.bf16.msra.mxu0 0
  %372 = vmatprep.subr.bf16.mxu0 0
  %373 = vmatpush2.bf16.msra.mxu0 0
  %374 = vmatprep.subr.bf16.mxu0 0
  %375 = vmatpush2.bf16.msra.mxu0 0
  %376 = vmatprep.subr.bf16.mxu0 0
  %377 = vmatpush2.bf16.msra.mxu0 0
  %378 = vmatprep.subr.bf16.mxu0 0
  %379 = vmatpush2.bf16.msra.mxu0 0
  %380 = vmatprep.subr.bf16.mxu0 0
  %381 = vmatpush2.bf16.msra.mxu0 0
  %382 = vmatprep.subr.bf16.mxu0 0
  %383 = vmatpush2.bf16.msra.mxu0 0
  %384 = vmatprep.mubr.bf16.mxu0 0
  %385 = vmatmul.mubr.bf16.gmra.mxu0 %v346
  %v386 = vpop.f32.mrf.mxu0
  %v387 = vadd.f32 0.0, %v386
  %v388 = vpop.f32.mrf.mxu0
  %v389 = vpop.f32.mrf.mxu0
  %v390 = vpop.f32.mrf.mxu0
  %391 = vdwg.mxu0
  %v392 = vld [vmem:[%s1 + $0x4] ss:$0 sm:$0xff]
  %v393 = vld [vmem:[%s1 + $0x5] ss:$0 sm:$0xff]
  %v394 = vsel %vm261, %v387, 0.0
  %v395 = vrot.slane %v394, 4
  %v396 = vadd.f32 %v394, %v395
  %v397 = vrot.slane %v396, 2
  %v398 = vadd.f32 %v396, %v397
  %v399 = vrot.slane %v398, 1
  %v400 = vadd.f32 %v398, %v399
  %v401 = vmul.f32 %v387, %v387
  %v402 = vsel %vm261, %v401, 0.0
  %v403 = vrot.slane %v402, 4
  %v404 = vadd.f32 %v402, %v403
  %v405 = vrot.slane %v404, 2
  %v406 = vadd.f32 %v404, %v405
  %v407 = vrot.slane %v406, 1
  %v408 = vadd.f32 %v406, %v407
  %v409 = vmul.f32 %v400, 0.125
  %v410 = vmul.f32 %v408, 0.125
  %v411 = vmul.f32 %v409, %v409
  %v412 = vsub.f32 %v410, %v411
  %v413 = vadd.f32 %v412, 1e-05
  %v414 = vrsqrt.pop %v413
  %v415 = vmul.f32 %v392, %v414
  %v416 = vmul.f32 %v409, %v415
  %v417 = vsub.f32 %v393, %v416
  %v418 = vmul.f32 %v387, %v415
  %v419 = vadd.f32 %v418, %v417
  %v420 = vmax.f32 %v419, 0.0
  %v421 = vld [vmem:[%s2 + $0x20] sm:$0xf]
  %v422 = vld [vmem:[%s2 + $0x24] sm:$0xf]
  %v423 = vpack.c.bf16 %v420, %v420
  %v424 = vld [vmem:[%s1 + $0x6] ss:$0 sm:$0xff]
  %v427 = vunpack.c.l.b16 %v421
  %v428 = vunpack.c.l.b16 %v422
  %v429 = vpack.c.b16 %v428, %v427
  %v432 = vsel %vm261, %v423, 0
  %434 = vmatprep.subr.bf16.mxu0 0
  %435 = vmatpush1.bf16.msra.mxu0 0
  %436 = vmatprep.subr.bf16.mxu0 0
  %437 = vmatpush1.bf16.msra.mxu0 0
  %438 = vmatprep.subr.bf16.mxu0 0
  %439 = vmatpush1.bf16.msra.mxu0 0
  %440 = vmatprep.subr.bf16.mxu0 0
  %441 = vmatpush1.bf16.msra.mxu0 0
  %442 = vmatprep.subr.bf16.mxu0 0
  %443 = vmatpush1.bf16.msra.mxu0 0
  %444 = vmatprep.subr.bf16.mxu0 0
  %445 = vmatpush1.bf16.msra.mxu0 0
  %446 = vmatprep.subr.bf16.mxu0 0
  %447 = vmatpush1.bf16.msra.mxu0 0
  %448 = vmatprep.subr.bf16.mxu0 0
  %449 = vmatpush1.bf16.msra.mxu0 %v429
  %450 = vmatprep.subr.bf16.mxu0 0
  %451 = vmatpush2.bf16.msra.mxu0 0
  %452 = vmatprep.subr.bf16.mxu0 0
  %453 = vmatpush2.bf16.msra.mxu0 0
  %454 = vmatprep.subr.bf16.mxu0 0
  %455 = vmatpush2.bf16.msra.mxu0 0
  %456 = vmatprep.subr.bf16.mxu0 0
  %457 = vmatpush2.bf16.msra.mxu0 0
  %458 = vmatprep.subr.bf16.mxu0 0
  %459 = vmatpush2.bf16.msra.mxu0 0
  %460 = vmatprep.subr.bf16.mxu0 0
  %461 = vmatpush2.bf16.msra.mxu0 0
  %462 = vmatprep.subr.bf16.mxu0 0
  %463 = vmatpush2.bf16.msra.mxu0 0
  %464 = vmatprep.subr.bf16.mxu0 0
  %465 = vmatpush2.bf16.msra.mxu0 0
  %466 = vmatprep.mubr.bf16.mxu0 0
  %467 = vmatmul.mubr.bf16.gmra.mxu0 %v432
  %v468 = vpop.f32.mrf.mxu0
  %v469 = vadd.f32 %v424, %v468
  %v470 = vpop.f32.mrf.mxu0
  %v471 = vpop.f32.mrf.mxu0
  %v472 = vpop.f32.mrf.mxu0
  %473 = vdwg.mxu0
  %v474 = vld [vmem:[%s4] sm:$0xff]
  %v475 = vld [vmem:[%s4 + $0x8] sm:$0xff]
  %v476 = vld [vmem:[%s4 + $0x10] sm:$0xff]
  %v477 = vld [vmem:[%s4 + $0x18] sm:$0xff]
  %v478 = vpack.c.bf16 %v469, %v469
  %s479 = scalar_lea.vmem %s1, 7
  %v480 = vld [vmem:[%s479] ss:$8 sm:$0x3]
  %v482 = vlaneseq
  %v483 = vshrl.u32 %v482, 7
  %v484 = vsub.s32 0, %v483
  %v485 = vrot.slane %v480, %v484
  %v486 = vlaneseq
  %v487 = vshrl.u32 %v486, 7
  %v488 = vsub.s32 1, %v487
  %v489 = vrot.slane %v480, %v488
  %v496 = vunpack.c.l.b16 %v474
  %v497 = vunpack.c.h.b16 %v474
  %v498 = vunpack.c.l.b16 %v475
  %v499 = vunpack.c.h.b16 %v475
  %v500 = vunpack.c.l.b16 %v476
  %v501 = vunpack.c.h.b16 %v476
  %v502 = vunpack.c.l.b16 %v477
  %v503 = vunpack.c.h.b16 %v477
  %v504 = vpack.c.b16 %v498, %v496
  %v505 = vpack.c.b16 %v499, %v497
  %v506 = vpack.c.b16 %v502, %v500
  %v507 = vpack.c.b16 %v503, %v501
  %v513 = vsel %vm215, %v478, 0
  %515 = vmatprep.subr.bf16.mxu0 0
  %516 = vmatpush1.bf16.msra.mxu0 0
  %517 = vmatprep.subr.bf16.mxu0 0
  %518 = vmatpush1.bf16.msra.mxu0 0
  %519 = vmatprep.subr.bf16.mxu0 0
  %520 = vmatpush1.bf16.msra.mxu0 0
  %521 = vmatprep.subr.bf16.mxu0 0
  %522 = vmatpush1.bf16.msra.mxu0 0
  %523 = vmatprep.subr.bf16.mxu0 0
  %524 = vmatpush1.bf16.msra.mxu0 0
  %525 = vmatprep.subr.bf16.mxu0 0
  %526 = vmatpush1.bf16.msra.mxu0 0
  %527 = vmatprep.subr.bf16.mxu0 %v507
  %528 = vmatpush1.bf16.msra.mxu0 %v506
  %529 = vmatprep.subr.bf16.mxu0 %v505
  %530 = vmatpush1.bf16.msra.mxu0 %v504
  %531 = vmatprep.subr.bf16.mxu0 0
  %532 = vmatpush2.bf16.msra.mxu0 0
  %533 = vmatprep.subr.bf16.mxu0 0
  %534 = vmatpush2.bf16.msra.mxu0 0
  %535 = vmatprep.subr.bf16.mxu0 0
  %536 = vmatpush2.bf16.msra.mxu0 0
  %537 = vmatprep.subr.bf16.mxu0 0
  %538 = vmatpush2.bf16.msra.mxu0 0
  %539 = vmatprep.subr.bf16.mxu0 0
  %540 = vmatpush2.bf16.msra.mxu0 0
  %541 = vmatprep.subr.bf16.mxu0 0
  %542 = vmatpush2.bf16.msra.mxu0 0
  %543 = vmatprep.subr.bf16.mxu0 0
  %544 = vmatpush2.bf16.msra.mxu0 0
  %545 = vmatprep.subr.bf16.mxu0 0
  %546 = vmatpush2.bf16.msra.mxu0 0
  %547 = vmatprep.mubr.bf16.mxu0 0
  %548 = vmatmul.mubr.bf16.gmra.mxu0 %v513
  %v549 = vpop.f32.mrf.mxu0
  %v550 = vadd.f32 %v485, %v549
  %v551 = vpop.f32.mrf.mxu0
  %v552 = vadd.f32 %v489, %v551
  %v553 = vpop.f32.mrf.mxu0
  %v554 = vpop.f32.mrf.mxu0
  %555 = vdwg.mxu0
  %556 = vst [vmem:[%s5] sm:$0xff] %v550
  %557 = vst [vmem:[%s5 + $0x8] sm:$0xff] %v552
  // Predicated region
  $region22: #{autoencoder_forward.1} parent=0 // pred_check
    _
  $region23: #{autoencoder_forward.1} parent=0 // pred_check_branch
    %559 = sbr.rel (0) target = $region25
  $region24: #{autoencoder_forward.1} parent=0 // pred_region
    _
  $region25: #{autoencoder_forward.1} parent=0 // pred_fallthru
    _
  // Predicated region
  $region26: #{autoencoder_forward.1} parent=0 // pred_check
    _
  $region27: #{autoencoder_forward.1} parent=0 // pred_check_branch
    %561 = sbr.rel (0) target = $region29
  $region28: #{autoencoder_forward.1} parent=0 // pred_region
    _
  $region29: #{autoencoder_forward.1} parent=0 // pred_fallthru
    _

</llo_original>
